<compile_context>
chip_gen: v6e
topology: v6e:2x2x1
jax: 0.10.0
libtpu: 0.0.40
codegen_flags: <defaults>
</compile_context>

<pallas_src>
import functools

import jax
import jax.numpy as jnp
from jax.experimental import pallas as pl
from jax.experimental.pallas import tpu as pltpu


# ------------------------------ tile helpers -------------------------------- #
def _round_up(x, m):
    return ((x + m - 1) // m) * m


def _choose_h_tile(H, th):
    """Largest multiple of 128 that divides H and is <= th, else full H."""
    if H <= th or H % 128 != 0:
        return H
    c = (th // 128) * 128
    while c >= 128:
        if H % c == 0:
            return c
        c -= 128
    return H


def _vmem_estimate(tm, th, D, E, itemsize):
    """Double-buffered input/output blocks + f32 accumulator + gate scratch."""
    blocks = (tm * D            # x tile
              + tm * max(E, 128)  # gate weights (lane-padded)
              + 2 * D * th        # w1 + w3
              + th * D            # w2
              + tm * D)           # output tile
    return 2 * blocks * itemsize + tm * D * 4 + tm * 4


def _choose_tiles(T, D, H, E, itemsize, tm_req, th_req, budget=56 << 20):
    """Pick (tm, th) under a chip-safe VMEM budget (v7x has 64 MiB/TC)."""
    tm = _round_up(min(T, tm_req), 8)
    th = _choose_h_tile(H, th_req)
    while _vmem_estimate(tm, th, D, E, itemsize) > budget:
        if th > 128 and H % 128 == 0:
            new_th = _choose_h_tile(H, max(128, th // 2))
            if new_th < th:
                th = new_th
                continue
        if tm > 64:
            tm = max(64, _round_up(tm // 2, 8))
            continue
        break
    return tm, th


# ------------------------- expert / combine kernel -------------------------- #
def _moe_kernel(flags_ref, gw_ref, x_ref, w1_ref, w3_ref, w2_ref, o_ref,
                acc_ref, gate_ref):
    i = pl.program_id(0)          # token tile (parallel)
    e = pl.program_id(1)          # expert      (reduction)
    h = pl.program_id(2)          # FFN hidden tile (reduction)
    n_e = pl.num_programs(1)
    n_h = pl.num_programs(2)

    @pl.when((e == 0) & (h == 0))
    def _init():
        acc_ref[...] = jnp.zeros_like(acc_ref)

    # Extract this expert's per-token gate weight column (exactly 0 for
    # unselected experts) once per (token-tile, expert) — not per h-slice.
    @pl.when(h == 0)
    def _gate():
        gw = gw_ref[...].astype(jnp.float32)                       # (tm, E)
        sel = jax.lax.broadcasted_iota(jnp.int32, gw.shape, 1) == e
        gate_ref[...] = jnp.sum(jnp.where(sel, gw, 0.0), axis=1, keepdims=True)

    # Skip (token-tile, expert) pairs with no routed tokens (gate weight == 0).
    @pl.when(flags_ref[i, e] > 0)
    def _compute():
        x = x_ref[...]                        # (tm, D)
        w1 = w1_ref[0]                        # (D, th)
        w3 = w3_ref[0]                        # (D, th)
        w2 = w2_ref[0]                        # (th, D)

        h1 = jnp.dot(x, w1, preferred_element_type=jnp.float32)
        h3 = jnp.dot(x, w3, preferred_element_type=jnp.float32)
        g = (h1 * jax.nn.sigmoid(h1)) * h3    # SwiGLU slab, f32 elementwise
        part = jnp.dot(g.astype(x.dtype), w2, preferred_element_type=jnp.float32)

        acc_ref[...] += gate_ref[...] * part  # (tm, 1) * (tm, D)

    @pl.when((e == n_e - 1) & (h == n_h - 1))
    def _finalize():
        o_ref[...] = acc_ref[...].astype(o_ref.dtype)


def moe_experts_pallas(x_flat, gate_w, flags, w1, w3, w2, *, tm, th, routed_k):
    """x_flat: (T_pad, D); gate_w: (T_pad, E); flags: (T_pad//tm, E) int32;
    w1/w3: (E, D, H); w2: (E, H, D)."""
    Tp, D = x_flat.shape
    E, _, H = w1.shape
    n_t = Tp // tm
    n_h = H // th
    bs = x_flat.dtype.itemsize

    vmem_est = _vmem_estimate(tm, th, D, E, bs)
    vmem_limit = max(32 << 20, min(64 << 20, int(vmem_est) + (8 << 20)))

    # Advisory cost: routed-only FLOPs (flag-gated), streamed weights per tile.
    flops = 6 * Tp * D * H * routed_k
    transcendentals = Tp * H * routed_k
    bytes_accessed = n_t * E * 3 * D * H * bs + 2 * Tp * D * bs + Tp * E * bs

    grid = (n_t, E, n_h)
    return pl.pallas_call(
        _moe_kernel,
        out_shape=jax.ShapeDtypeStruct((Tp, D), x_flat.dtype),
        grid_spec=pltpu.PrefetchScalarGridSpec(
            num_scalar_prefetch=1,
            grid=grid,
            in_specs=[
                pl.BlockSpec((tm, E), lambda i, e, h, flags: (i, 0)),        # gate w
                pl.BlockSpec((tm, D), lambda i, e, h, flags: (i, 0)),        # x tile
                pl.BlockSpec((1, D, th), lambda i, e, h, flags: (e, 0, h)),  # w1
                pl.BlockSpec((1, D, th), lambda i, e, h, flags: (e, 0, h)),  # w3
                pl.BlockSpec((1, th, D), lambda i, e, h, flags: (e, h, 0)),  # w2
            ],
            out_specs=pl.BlockSpec((tm, D), lambda i, e, h, flags: (i, 0)),
            scratch_shapes=[
                pltpu.VMEM((tm, D), jnp.float32),   # output accumulator
                pltpu.VMEM((tm, 1), jnp.float32),   # per-expert gate column
            ],
        ),
        compiler_params=pltpu.CompilerParams(
            dimension_semantics=("parallel", "arbitrary", "arbitrary"),
            vmem_limit_bytes=vmem_limit,
        ),
        cost_estimate=pl.CostEstimate(
            flops=int(flops),
            transcendentals=int(transcendentals),
            bytes_accessed=int(bytes_accessed),
        ),
    )(flags, gate_w, x_flat, w1, w3, w2)


# ------------------------------ full forward -------------------------------- #
@functools.partial(jax.jit, static_argnames=("num_experts_per_tok", "tm", "th"))
def moe_layer_forward(x, wg, w1, w3, w2, num_experts_per_tok=2, tm=512, th=512):
    B, S, D = x.shape
    E = wg.shape[1]
    H = w1.shape[2]
    T = B * S
    x_flat = x.reshape(T, D)

    # Gate: tiny (T, D) @ (D, E) matmul with E << 128 lanes — XLA handles this
    # better than a masked-lane Pallas store.
    logits = jnp.dot(x_flat, wg)                                        # (T, E)

    # Routing glue (matches torch.topk / F.softmax(dtype=float)).
    # TODO(synk): data-dependent token gather/scatter (megablocks-style
    # grouping) has no simple BlockSpec expression; we use a dense per-token
    # gate-weight matrix (0 for unselected experts) instead.
    topk_vals, topk_idx = jax.lax.top_k(logits, num_experts_per_tok)
    topk_w = jax.nn.softmax(topk_vals.astype(jnp.float32), axis=-1).astype(x.dtype)
    onehot = jax.nn.one_hot(topk_idx, E, dtype=topk_w.dtype)            # (T, K, E)
    dense_w = jnp.einsum("tk,tke->te", topk_w, onehot)                  # (T, E), 0 if unselected

    # Tile selection + token padding (correctness for arbitrary B*S).
    tm_eff, th_eff = _choose_tiles(T, D, H, E, x.dtype.itemsize, tm, th)
    T_pad = _round_up(T, tm_eff)
    pad = T_pad - T
    if pad:
        x_flat = jnp.pad(x_flat, ((0, pad), (0, 0)))
        dense_w = jnp.pad(dense_w, ((0, pad), (0, 0)))

    # Per-(token-tile, expert) "any routed token" flag for compute skipping.
    n_t = T_pad // tm_eff
    flags = (dense_w.reshape(n_t, tm_eff, E) != 0).any(axis=1).astype(jnp.int32)

    out = moe_experts_pallas(x_flat, dense_w, flags, w1, w3, w2,
                             tm=tm_eff, th=th_eff, routed_k=num_experts_per_tok)
    return out[:T].reshape(B, S, D), logits.reshape(B, S, E)


# -------------------------------- reference --------------------------------- #
def moe_layer_reference(x, wg, w1, w3, w2, num_experts_per_tok=2):
    B, S, D = x.shape
    E = wg.shape[1]
    x_flat = x.reshape(-1, D)
    logits = jnp.dot(x_flat, wg)
    topk_vals, topk_idx = jax.lax.top_k(logits, num_experts_per_tok)
    topk_w = jax.nn.softmax(topk_vals.astype(jnp.float32), axis=-1).astype(x.dtype)
    onehot = jax.nn.one_hot(topk_idx, E, dtype=topk_w.dtype)
    dense_w = jnp.einsum("tk,tke->te", topk_w, onehot)
    res = jnp.zeros(x_flat.shape, jnp.float32)
    for e in range(E):
        h1 = jnp.dot(x_flat, w1[e])
        h3 = jnp.dot(x_flat, w3[e])
        out_e = jnp.dot(h1 * jax.nn.sigmoid(h1) * h3, w2[e])
        res = res + dense_w[:, e:e + 1].astype(jnp.float32) * out_e
    return res.astype(x.dtype).reshape(B, S, D)


if __name__ == "__main__":
    # Small, MoE-consistent shapes: batch=2, seq=8, dim=32, hidden=64,
    # num_experts=4, num_experts_per_tok=2.
    B, S, D, H, E, K = 2, 8, 32, 64, 4, 2

    key = jax.random.PRNGKey(0)
    kx, kg, k1, k3, k2 = jax.random.split(key, 5)
    x = jax.random.normal(kx, (B, S, D), dtype=jnp.float32)
    wg = jax.random.normal(kg, (D, E), dtype=jnp.float32) * 0.1
    w1 = jax.random.normal(k1, (E, D, H), dtype=jnp.float32) * 0.1
    w3 = jax.random.normal(k3, (E, D, H), dtype=jnp.float32) * 0.1
    w2 = jax.random.normal(k2, (E, H, D), dtype=jnp.float32) * 0.1

    out, gate_logits = moe_layer_forward(x, wg, w1, w3, w2, num_experts_per_tok=K)
    out = jax.block_until_ready(out)

    ref = moe_layer_reference(x, wg, w1, w3, w2, num_experts_per_tok=K)
    assert out.shape == x.shape
    assert gate_logits.shape == (B, S, E)
    assert jnp.allclose(out, ref, rtol=5e-4, atol=1e-4), "mismatch vs reference"

    print("KERNEL_OK")
</pallas_src>

<mosaic_0001>
module attributes {stable_mosaic.version = 11 : i64} {
  func.func @_moe_kernel(%arg0: i32, %arg1: i32, %arg2: i32, %arg3: memref<1x4xi32, #tpu.memory_space<smem>>, %arg4: memref<16x4xf32, #tpu.memory_space<vmem>>, %arg5: memref<16x32xf32, #tpu.memory_space<vmem>>, %arg6: memref<1x32x64xf32, #tpu.memory_space<vmem>>, %arg7: memref<1x32x64xf32, #tpu.memory_space<vmem>>, %arg8: memref<1x64x32xf32, #tpu.memory_space<vmem>>, %arg9: memref<16x32xf32, #tpu.memory_space<vmem>>, %arg10: memref<16x32xf32, #tpu.memory_space<vmem>>, %arg11: memref<16x1xf32, #tpu.memory_space<vmem>>) attributes {dimension_semantics = [#tpu.dimension_semantics<parallel>, #tpu.dimension_semantics<arbitrary>, #tpu.dimension_semantics<arbitrary>], iteration_bounds = array<i64: 1, 4, 1>, scalar_prefetch = 1 : i64, scratch_operands = 2 : i64, tpu.core_type = #tpu.core_type<tc>, window_params = [{transform_indices = @transform_0, window_bounds = array<i64: 16, 4>}, {transform_indices = @transform_1, window_bounds = array<i64: 16, 32>}, {transform_indices = @transform_2, window_bounds = array<i64: 1, 32, 64>}, {transform_indices = @transform_3, window_bounds = array<i64: 1, 32, 64>}, {transform_indices = @transform_4, window_bounds = array<i64: 1, 64, 32>}, {transform_indices = @transform_5, window_bounds = array<i64: 16, 32>}]} {
    %c0_i32 = arith.constant 0 : i32
    %0 = arith.cmpi eq, %arg1, %c0_i32 : i32
    %c0_i32_0 = arith.constant 0 : i32
    %1 = arith.cmpi eq, %arg2, %c0_i32_0 : i32
    %2 = arith.andi %0, %1 : i1
    %3 = arith.extui %2 : i1 to i32
    %c0_i32_1 = arith.constant 0 : i32
    %4 = arith.cmpi ne, %3, %c0_i32_1 : i32
    scf.if %4 {
      %cst = arith.constant 0.000000e+00 : f32
      %19 = vector.broadcast %cst : f32 to vector<16x32xf32>
      %c0 = arith.constant 0 : index
      %c0_8 = arith.constant 0 : index
      %20 = vector.load %arg10[%c0, %c0_8] : memref<16x32xf32, #tpu.memory_space<vmem>>, vector<16x32xf32>
      tpu.vector_store %arg10[%c0, %c0_8], %19 {strides = array<i32>} : memref<16x32xf32, #tpu.memory_space<vmem>>, vector<16x32xf32>,
    } else {
    }
    %c0_i32_2 = arith.constant 0 : i32
    %5 = arith.cmpi eq, %arg2, %c0_i32_2 : i32
    %6 = arith.extui %5 : i1 to i32
    %c0_i32_3 = arith.constant 0 : i32
    %7 = arith.cmpi ne, %6, %c0_i32_3 : i32
    scf.if %7 {
      %c0 = arith.constant 0 : index
      %c0_8 = arith.constant 0 : index
      %19 = vector.load %arg4[%c0, %c0_8] : memref<16x4xf32, #tpu.memory_space<vmem>>, vector<16x4xf32>
      %20 = tpu.iota {dimensions = array<i32: 1>} : vector<16x4xi32>
      %21 = vector.broadcast %arg1 : i32 to vector<16x4xi32>
      %22 = arith.cmpi eq, %20, %21 : vector<16x4xi32>
      %cst = arith.constant 0.000000e+00 : f32
      %23 = vector.broadcast %cst : f32 to vector<16x4xf32>
      %24 = arith.select %22, %19, %23 : vector<16x4xi1>, vector<16x4xf32>
      %cst_9 = arith.constant dense<0.000000e+00> : vector<16xf32>
      %25 = vector.multi_reduction <add>, %24, %cst_9 [1] : vector<16x4xf32> to vector<16xf32>
      %26 = vector.shape_cast %25 : vector<16xf32> to vector<16x1xf32>
      %c0_10 = arith.constant 0 : index
      %c0_11 = arith.constant 0 : index
      %27 = vector.load %arg11[%c0_10, %c0_11] : memref<16x1xf32, #tpu.memory_space<vmem>>, vector<16x1xf32>
      tpu.vector_store %arg11[%c0_10, %c0_11], %26 {strides = array<i32>} : memref<16x1xf32, #tpu.memory_space<vmem>>, vector<16x1xf32>,
    } else {
    }
    %8 = arith.index_cast %arg0 : i32 to index
    %9 = arith.index_cast %arg1 : i32 to index
    %10 = memref.load %arg3[%8, %9] : memref<1x4xi32, #tpu.memory_space<smem>>
    %c0_i32_4 = arith.constant 0 : i32
    %11 = arith.cmpi sgt, %10, %c0_i32_4 : i32
    %12 = arith.extui %11 : i1 to i32
    %c0_i32_5 = arith.constant 0 : i32
    %13 = arith.cmpi ne, %12, %c0_i32_5 : i32
    scf.if %13 {
      %c0 = arith.constant 0 : index
      %c0_8 = arith.constant 0 : index
      %19 = vector.load %arg5[%c0, %c0_8] : memref<16x32xf32, #tpu.memory_space<vmem>>, vector<16x32xf32>
      %c0_9 = arith.constant 0 : index
      %c0_10 = arith.constant 0 : index
      %c0_11 = arith.constant 0 : index
      %20 = vector.load %arg6[%c0_9, %c0_10, %c0_11] : memref<1x32x64xf32, #tpu.memory_space<vmem>>, vector<1x32x64xf32>
      %21 = vector.shape_cast %20 : vector<1x32x64xf32> to vector<32x64xf32>
      %c0_12 = arith.constant 0 : index
      %c0_13 = arith.constant 0 : index
      %c0_14 = arith.constant 0 : index
      %22 = vector.load %arg7[%c0_12, %c0_13, %c0_14] : memref<1x32x64xf32, #tpu.memory_space<vmem>>, vector<1x32x64xf32>
      %23 = vector.shape_cast %22 : vector<1x32x64xf32> to vector<32x64xf32>
      %c0_15 = arith.constant 0 : index
      %c0_16 = arith.constant 0 : index
      %c0_17 = arith.constant 0 : index
      %24 = vector.load %arg8[%c0_15, %c0_16, %c0_17] : memref<1x64x32xf32, #tpu.memory_space<vmem>>, vector<1x64x32xf32>
      %25 = vector.shape_cast %24 : vector<1x64x32xf32> to vector<64x32xf32>
      %cst = arith.constant dense<0.000000e+00> : vector<16x64xf32>
      %26 = tpu.matmul %19, %21, %cst {dimension_numbers = #tpu.dot_dimension_numbers<[1], [0], [0], [1], [0, 0, 1, 1], [], []>} : vector<16x32xf32>, vector<32x64xf32>, vector<16x64xf32> -> vector<16x64xf32>
      %cst_18 = arith.constant dense<0.000000e+00> : vector<16x64xf32>
      %27 = tpu.matmul %19, %23, %cst_18 {dimension_numbers = #tpu.dot_dimension_numbers<[1], [0], [0], [1], [0, 0, 1, 1], [], []>} : vector<16x32xf32>, vector<32x64xf32>, vector<16x64xf32> -> vector<16x64xf32>
      %28 = arith.negf %26 : vector<16x64xf32>
      %29 = math.exp %28 : vector<16x64xf32>
      %cst_19 = arith.constant 1.000000e+00 : f32
      %30 = vector.broadcast %cst_19 : f32 to vector<16x64xf32>
      %31 = arith.addf %30, %29 : vector<16x64xf32>
      %32 = arith.divf %30, %31 : vector<16x64xf32>
      %33 = arith.mulf %26, %32 : vector<16x64xf32>
      %34 = arith.mulf %33, %27 : vector<16x64xf32>
      %cst_20 = arith.constant dense<0.000000e+00> : vector<16x32xf32>
      %35 = tpu.matmul %34, %25, %cst_20 {dimension_numbers = #tpu.dot_dimension_numbers<[1], [0], [0], [1], [0, 0, 1, 1], [], []>} : vector<16x64xf32>, vector<64x32xf32>, vector<16x32xf32> -> vector<16x32xf32>
      %c0_21 = arith.constant 0 : index
      %c0_22 = arith.constant 0 : index
      %36 = vector.load %arg10[%c0_21, %c0_22] : memref<16x32xf32, #tpu.memory_space<vmem>>, vector<16x32xf32>
      %c0_23 = arith.constant 0 : index
      %c0_24 = arith.constant 0 : index
      %37 = vector.load %arg11[%c0_23, %c0_24] : memref<16x1xf32, #tpu.memory_space<vmem>>, vector<16x1xf32>
      %38 = vector.broadcast %37 : vector<16x1xf32> to vector<16x32xf32>
      %39 = arith.mulf %38, %35 : vector<16x32xf32>
      %40 = arith.addf %36, %39 : vector<16x32xf32>
      %c0_25 = arith.constant 0 : index
      %c0_26 = arith.constant 0 : index
      %41 = vector.load %arg10[%c0_25, %c0_26] : memref<16x32xf32, #tpu.memory_space<vmem>>, vector<16x32xf32>
      tpu.vector_store %arg10[%c0_25, %c0_26], %40 {strides = array<i32>} : memref<16x32xf32, #tpu.memory_space<vmem>>, vector<16x32xf32>,
    } else {
    }
    %c3_i32 = arith.constant 3 : i32
    %14 = arith.cmpi eq, %arg1, %c3_i32 : i32
    %c0_i32_6 = arith.constant 0 : i32
    %15 = arith.cmpi eq, %arg2, %c0_i32_6 : i32
    %16 = arith.andi %14, %15 : i1
    %17 = arith.extui %16 : i1 to i32
    %c0_i32_7 = arith.constant 0 : i32
    %18 = arith.cmpi ne, %17, %c0_i32_7 : i32
    scf.if %18 {
      %c0 = arith.constant 0 : index
      %c0_8 = arith.constant 0 : index
      %19 = vector.load %arg10[%c0, %c0_8] : memref<16x32xf32, #tpu.memory_space<vmem>>, vector<16x32xf32>
      %c0_9 = arith.constant 0 : index
      %c0_10 = arith.constant 0 : index
      %20 = vector.load %arg9[%c0_9, %c0_10] : memref<16x32xf32, #tpu.memory_space<vmem>>, vector<16x32xf32>
      tpu.vector_store %arg9[%c0_9, %c0_10], %19 {strides = array<i32>} : memref<16x32xf32, #tpu.memory_space<vmem>>, vector<16x32xf32>,
    } else {
    }
    return
  }
  func.func @transform_0(%arg0: i32, %arg1: i32, %arg2: i32, %arg3: memref<1x4xi32, #tpu.memory_space<smem>>) -> (i32, i32) {
    %c0_i32 = arith.constant 0 : i32
    %c0_i32_0 = arith.constant 0 : i32
    return %arg0, %c0_i32 : i32, i32
  }
  func.func @transform_1(%arg0: i32, %arg1: i32, %arg2: i32, %arg3: memref<1x4xi32, #tpu.memory_space<smem>>) -> (i32, i32) {
    %c0_i32 = arith.constant 0 : i32
    %c0_i32_0 = arith.constant 0 : i32
    return %arg0, %c0_i32 : i32, i32
  }
  func.func @transform_2(%arg0: i32, %arg1: i32, %arg2: i32, %arg3: memref<1x4xi32, #tpu.memory_space<smem>>) -> (i32, i32, i32) {
    %c0_i32 = arith.constant 0 : i32
    %c0_i32_0 = arith.constant 0 : i32
    return %arg1, %c0_i32, %arg2 : i32, i32, i32
  }
  func.func @transform_3(%arg0: i32, %arg1: i32, %arg2: i32, %arg3: memref<1x4xi32, #tpu.memory_space<smem>>) -> (i32, i32, i32) {
    %c0_i32 = arith.constant 0 : i32
    %c0_i32_0 = arith.constant 0 : i32
    return %arg1, %c0_i32, %arg2 : i32, i32, i32
  }
  func.func @transform_4(%arg0: i32, %arg1: i32, %arg2: i32, %arg3: memref<1x4xi32, #tpu.memory_space<smem>>) -> (i32, i32, i32) {
    %c0_i32 = arith.constant 0 : i32
    %c0_i32_0 = arith.constant 0 : i32
    return %arg1, %arg2, %c0_i32 : i32, i32, i32
  }
  func.func @transform_5(%arg0: i32, %arg1: i32, %arg2: i32, %arg3: memref<1x4xi32, #tpu.memory_space<smem>>) -> (i32, i32) {
    %c0_i32 = arith.constant 0 : i32
    %c0_i32_0 = arith.constant 0 : i32
    return %arg0, %c0_i32 : i32, i32
  }
}

</mosaic_0001>

<llo_original>
// kernel: moe_layer_forward.1
$region0: #{moe_layer_forward.1}
  #allocation0 [shape = 'u32[]', space=smem, size = 0x4, offset = 0x4, fixed_abs, tag = 'smem constant byte address 0x4 - core index']
  #allocation1 [shape = 'u32[144,128]{1,0:T(1,128)}', space=vmem, size = 0x12000, scoped, tag = 'internal scratch']
  #allocation2 [shape = 'f32[16,32]{1,0:T(8,128)}', space=vmem, size = 0x2000, scoped, tag = 'scratch operand']
  #allocation3 [shape = 'f32[16,1]{1,0:T(8,128)}', space=vmem, size = 0x2000, scoped, tag = 'scratch operand']
  #allocation4 [shape = 's32[1]{0}', space=sflag, size = 0x4, scoped, tag = 'scoped memory for moe_layer_forward.1']
  #allocation5 [shape = 'u8[512]{0}', space=smem, size = 0x200, scoped, tag = 'prefetched SMEM operand 0']
  %s0 = inlined_call_operand.vmem [shape: s32[1,4], index: 0, kind: input, shape index: {}]
  %s1 = inlined_call_operand.vmem [shape: f32[16,4], index: 1, kind: input, shape index: {}]
  %s2 = inlined_call_operand.vmem [shape: f32[16,32], index: 2, kind: input, shape index: {}]
  %s3 = inlined_call_operand.vmem [shape: f32[4,32,64], index: 3, kind: input, shape index: {}]
  %s4 = inlined_call_operand.vmem [shape: f32[4,32,64], index: 4, kind: input, shape index: {}]
  %s5 = inlined_call_operand.vmem [shape: f32[4,64,32], index: 5, kind: input, shape index: {}]
  %s6 = inlined_call_operand.hbm [shape: f32[16,32], index: 6, kind: output, shape index: {}]
  %s7 = sld [smem:[#allocation0]]
  $region69: #{moe_layer_forward.1} parent=0
    _
  %s9 = ssub.s32 1, %s7
  %s10 = scalar_select 0, %s9, %s7
  %s11 = sshll.u32 %s0, 4
  %s12 = int_to_ptr.vmem [resolvable:$true] %s11
  %14 = dma.vmem_to_smem %s12, 16, [#allocation5], [#allocation4]
  %15 = dma.done [#allocation4], 16
  %16 = sfence
  $region1: #{moe_layer_forward.1} parent=0
    #allocation6 [shape = 'u8[8192]{0}', space=vmem, size = 0x2000, scoped, tag = 'output window, operand 0, single buffered']
    #allocation7 [shape = 's32[2]{0}', space=sflag, size = 0x8, scoped, tag = 'scoped memory for moe_layer_forward.1']
    %17 = vsyncpa [#allocation7], 0
    loop: start=0, step=1, limit=6
    $region2: #{moe_layer_forward.1} parent=1 // loop_pre_header
      _
    $region3: #{moe_layer_forward.1} parent=1 // loop_header
      %s19 = sphi 0, %s23
      %p20 = scmp.ge.s32.totalorder %s19, 6
      %s26 = sphi 0, %s45
      %s27 = sphi 0, %s41
      %s28 = sphi 0, %s37
      %s29 = sphi 0, %s26
      %s30 = sphi 0, %s27
      %s31 = sphi 0, %s28
      %s32 = sphi 0, %s29
      %s33 = sphi 0, %s30
      %s34 = sphi 0, %s31
      %s48 = sphi 0, %s50
      %s51 = sphi 0, %s48
      %s52 = sphi 0, %s51
      %s68 = sphi 0, %s52
      %s74 = sphi 0, %s76
      %s77 = sphi 0, %s74
      %s78 = sphi 0, %s77
      %s94 = sphi 0, %s78
      %s102 = sphi 0, %s104
      %s105 = sphi 0, %s102
      %s106 = sphi 0, %s105
      %s122 = sphi 0, %s106
      %s130 = sphi 0, %s132
      %s133 = sphi 0, %s130
      %s134 = sphi 0, %s133
      %s150 = sphi 0, %s134
      %s158 = sphi 0, %s160
      %s161 = sphi 0, %s158
      %s162 = sphi 0, %s161
      %s178 = sphi 0, %s162
      %s184 = sphi 0, %s186
      %s187 = sphi 0, %s184
      %s188 = sphi 0, %s187
      %s204 = sphi 0, %s188
    $region4: #{moe_layer_forward.1} parent=1 // loop_header_branch
      %22 = sbr.rel (%p20) target = $region8
    $region5: #{moe_layer_forward.1} parent=1 // loop_body
      %s24 = ssub.s32 %s19, 1
      %s25 = ssub.s32 %s19, 2
      %s35 = sadd.s32 1, %s28
      %p36 = scmp.ge.s32.totalorder %s35, 1
      %s37 = scalar_select %p36, 0, %s35
      %s38 = sadd.s32 1, %s27
      %s39 = scalar_select %p36, %s38, %s27
      %p40 = scmp.ge.s32.totalorder %s39, 4
      %s41 = scalar_select %p40, 0, %s39
      %s42 = sadd.s32 1, %s26
      %s43 = scalar_select %p40, %s42, %s26
      %p44 = scmp.ge.s32.totalorder %s43, 1
      %s45 = scalar_select %p44, 0, %s43
      %s46 = ssub.s32 %s26, %s45
      %p47 = scmp.eq.s32.totalorder %s46, 0
      %s49 = sadd.s32 %s48, 1
      %s50 = scalar_select %p47, %s48, %s49
      %p53 = pneg %p47
      %p54 = scmp.eq.s32.totalorder %s19, 3
      %p55 = por %p53, %p54
      %p56 = scmp.ne.s32.totalorder %s48, %s51
      %p57 = scmp.eq.s32.totalorder %s19, 0
      %p58 = por %p56, %p57
      %p59 = scmp.ne.s32.totalorder %s48, %s51
      %p60 = scmp.eq.s32.totalorder %s24, 3
      %p61 = por %p59, %p60
      %p62 = scmp.ne.s32.totalorder %s51, %s52
      %p63 = scmp.eq.s32.totalorder %s24, 0
      %p64 = por %p62, %p63
      %p65 = scmp.ne.s32.totalorder %s51, %s52
      %p66 = scmp.eq.s32.totalorder %s25, 3
      %p67 = por %p65, %p66
      %p69 = scmp.ne.s32.totalorder %s52, %s68
      %p70 = scmp.eq.s32.totalorder %s25, 0
      %p71 = por %p69, %p70
      %s72 = ssub.s32 %s26, %s45
      %p73 = scmp.eq.s32.totalorder %s72, 0
      %s75 = sadd.s32 %s74, 1
      %s76 = scalar_select %p73, %s74, %s75
      %p79 = pneg %p73
      %p80 = scmp.eq.s32.totalorder %s19, 3
      %p81 = por %p79, %p80
      %p82 = scmp.ne.s32.totalorder %s74, %s77
      %p83 = scmp.eq.s32.totalorder %s19, 0
      %p84 = por %p82, %p83
      %p85 = scmp.ne.s32.totalorder %s74, %s77
      %p86 = scmp.eq.s32.totalorder %s24, 3
      %p87 = por %p85, %p86
      %p88 = scmp.ne.s32.totalorder %s77, %s78
      %p89 = scmp.eq.s32.totalorder %s24, 0
      %p90 = por %p88, %p89
      %p91 = scmp.ne.s32.totalorder %s77, %s78
      %p92 = scmp.eq.s32.totalorder %s25, 3
      %p93 = por %p91, %p92
      %p95 = scmp.ne.s32.totalorder %s78, %s94
      %p96 = scmp.eq.s32.totalorder %s25, 0
      %p97 = por %p95, %p96
      %s98 = ssub.s32 %s27, %s41
      %s99 = ssub.s32 %s28, %s37
      %s100 = sor.u32 %s98, %s99
      %p101 = scmp.eq.s32.totalorder %s100, 0
      %s103 = sadd.s32 %s102, 1
      %s104 = scalar_select %p101, %s102, %s103
      %p107 = pneg %p101
      %p108 = scmp.eq.s32.totalorder %s19, 3
      %p109 = por %p107, %p108
      %p110 = scmp.ne.s32.totalorder %s102, %s105
      %p111 = scmp.eq.s32.totalorder %s19, 0
      %p112 = por %p110, %p111
      %p113 = scmp.ne.s32.totalorder %s102, %s105
      %p114 = scmp.eq.s32.totalorder %s24, 3
      %p115 = por %p113, %p114
      %p116 = scmp.ne.s32.totalorder %s105, %s106
      %p117 = scmp.eq.s32.totalorder %s24, 0
      %p118 = por %p116, %p117
      %p119 = scmp.ne.s32.totalorder %s105, %s106
      %p120 = scmp.eq.s32.totalorder %s25, 3
      %p121 = por %p119, %p120
      %p123 = scmp.ne.s32.totalorder %s106, %s122
      %p124 = scmp.eq.s32.totalorder %s25, 0
      %p125 = por %p123, %p124
      %s126 = ssub.s32 %s27, %s41
      %s127 = ssub.s32 %s28, %s37
      %s128 = sor.u32 %s126, %s127
      %p129 = scmp.eq.s32.totalorder %s128, 0
      %s131 = sadd.s32 %s130, 1
      %s132 = scalar_select %p129, %s130, %s131
      %p135 = pneg %p129
      %p136 = scmp.eq.s32.totalorder %s19, 3
      %p137 = por %p135, %p136
      %p138 = scmp.ne.s32.totalorder %s130, %s133
      %p139 = scmp.eq.s32.totalorder %s19, 0
      %p140 = por %p138, %p139
      %p141 = scmp.ne.s32.totalorder %s130, %s133
      %p142 = scmp.eq.s32.totalorder %s24, 3
      %p143 = por %p141, %p142
      %p144 = scmp.ne.s32.totalorder %s133, %s134
      %p145 = scmp.eq.s32.totalorder %s24, 0
      %p146 = por %p144, %p145
      %p147 = scmp.ne.s32.totalorder %s133, %s134
      %p148 = scmp.eq.s32.totalorder %s25, 3
      %p149 = por %p147, %p148
      %p151 = scmp.ne.s32.totalorder %s134, %s150
      %p152 = scmp.eq.s32.totalorder %s25, 0
      %p153 = por %p151, %p152
      %s154 = ssub.s32 %s27, %s41
      %s155 = ssub.s32 %s28, %s37
      %s156 = sor.u32 %s154, %s155
      %p157 = scmp.eq.s32.totalorder %s156, 0
      %s159 = sadd.s32 %s158, 1
      %s160 = scalar_select %p157, %s158, %s159
      %p163 = pneg %p157
      %p164 = scmp.eq.s32.totalorder %s19, 3
      %p165 = por %p163, %p164
      %p166 = scmp.ne.s32.totalorder %s158, %s161
      %p167 = scmp.eq.s32.totalorder %s19, 0
      %p168 = por %p166, %p167
      %p169 = scmp.ne.s32.totalorder %s158, %s161
      %p170 = scmp.eq.s32.totalorder %s24, 3
      %p171 = por %p169, %p170
      %p172 = scmp.ne.s32.totalorder %s161, %s162
      %p173 = scmp.eq.s32.totalorder %s24, 0
      %p174 = por %p172, %p173
      %p175 = scmp.ne.s32.totalorder %s161, %s162
      %p176 = scmp.eq.s32.totalorder %s25, 3
      %p177 = por %p175, %p176
      %p179 = scmp.ne.s32.totalorder %s162, %s178
      %p180 = scmp.eq.s32.totalorder %s25, 0
      %p181 = por %p179, %p180
      %s182 = ssub.s32 %s26, %s45
      %p183 = scmp.eq.s32.totalorder %s182, 0
      %s185 = sadd.s32 %s184, 1
      %s186 = scalar_select %p183, %s184, %s185
      %p189 = pneg %p183
      %p190 = scmp.eq.s32.totalorder %s19, 3
      %p191 = por %p189, %p190
      %p192 = scmp.ne.s32.totalorder %s184, %s187
      %p193 = scmp.eq.s32.totalorder %s19, 0
      %p194 = por %p192, %p193
      %p195 = scmp.ne.s32.totalorder %s184, %s187
      %p196 = scmp.eq.s32.totalorder %s24, 3
      %p197 = por %p195, %p196
      %p198 = scmp.ne.s32.totalorder %s187, %s188
      %p199 = scmp.eq.s32.totalorder %s24, 0
      %p200 = por %p198, %p199
      %p201 = scmp.ne.s32.totalorder %s187, %s188
      %p202 = scmp.eq.s32.totalorder %s25, 3
      %p203 = por %p201, %p202
      %p205 = scmp.ne.s32.totalorder %s188, %s204
      %p206 = scmp.eq.s32.totalorder %s25, 0
      %p207 = por %p205, %p206
      %p208 = scmp.le.s32.totalorder 1, %s19
      %p209 = scmp.lt.s32.totalorder %s19, 5
      %p210 = pnand %p208, %p209
      %p211 = pneg %p210
      // Predicated region
      $region9: #{moe_layer_forward.1} parent=5 // pred_check
        _
      $region10: #{moe_layer_forward.1} parent=5 // pred_check_branch
        %213 = sbr.rel (%p210) target = $region12
      $region11: #{moe_layer_forward.1} parent=5 // pred_region
        %s214 = ssub.s32 %s19, 1
        // Predicated region
        $region13: #{moe_layer_forward.1} parent=11 // pred_check
          %p215 = pneg %p64
        $region14: #{moe_layer_forward.1} parent=11 // pred_check_branch
          %217 = sbr.rel (%p215) target = $region16
        $region15: #{moe_layer_forward.1} parent=11 // pred_region
          %s218 = smul.u32 2, %s29
          %p219 = scmp.lt.s32.totalorder %s218, 1
          %s220 = scalar_select %p219, %s218, 1
          %s221 = smul.addr %s220, 8
          %s222 = scalar_lea.vmem %s1, %s221
          %s223 = smul.u32 2, %s29
        $region16: #{moe_layer_forward.1} parent=11 // pred_fallthru
          _
        // Predicated region
        $region17: #{moe_layer_forward.1} parent=11 // pred_check
          %p224 = pneg %p90
        $region18: #{moe_layer_forward.1} parent=11 // pred_check_branch
          %226 = sbr.rel (%p224) target = $region20
        $region19: #{moe_layer_forward.1} parent=11 // pred_region
          %s227 = smul.u32 2, %s29
          %p228 = scmp.lt.s32.totalorder %s227, 1
          %s229 = scalar_select %p228, %s227, 1
          %s230 = smul.addr %s229, 8
          %s231 = scalar_lea.vmem %s2, %s230
          %s232 = smul.u32 2, %s29
        $region20: #{moe_layer_forward.1} parent=11 // pred_fallthru
          _
      $region12: #{moe_layer_forward.1} parent=5 // pred_fallthru
        _
      %p233 = scmp.lt.s32.totalorder %s19, 4
      // Predicated region
      $region21: #{moe_layer_forward.1} parent=5 // pred_check
        %p234 = pneg %p233
      $region22: #{moe_layer_forward.1} parent=5 // pred_check_branch
        %236 = sbr.rel (%p234) target = $region24
      $region23: #{moe_layer_forward.1} parent=5 // pred_region
        // Predicated region
        $region25: #{moe_layer_forward.1} parent=23 // pred_check
          %p237 = pneg %p112
        $region26: #{moe_layer_forward.1} parent=23 // pred_check_branch
          %239 = sbr.rel (%p237) target = $region28
        $region27: #{moe_layer_forward.1} parent=23 // pred_region
          %p240 = scmp.lt.s32.totalorder %s27, 3
          %s241 = scalar_select %p240, %s27, 3
          %p242 = scmp.lt.s32.totalorder %s28, 0
          %s243 = scalar_select %p242, %s28, 0
          %s244 = smul.addr %s241, 4
          %s245 = sadd.s32 %s243, %s244
          %s246 = smul.addr %s245, 8
          %s247 = scalar_lea.vmem %s3, %s246
        $region28: #{moe_layer_forward.1} parent=23 // pred_fallthru
          _
        // Predicated region
        $region29: #{moe_layer_forward.1} parent=23 // pred_check
          %p248 = pneg %p140
        $region30: #{moe_layer_forward.1} parent=23 // pred_check_branch
          %250 = sbr.rel (%p248) target = $region32
        $region31: #{moe_layer_forward.1} parent=23 // pred_region
          %p251 = scmp.lt.s32.totalorder %s27, 3
          %s252 = scalar_select %p251, %s27, 3
          %p253 = scmp.lt.s32.totalorder %s28, 0
          %s254 = scalar_select %p253, %s28, 0
          %s255 = smul.addr %s252, 4
          %s256 = sadd.s32 %s254, %s255
          %s257 = smul.addr %s256, 8
          %s258 = scalar_lea.vmem %s4, %s257
        $region32: #{moe_layer_forward.1} parent=23 // pred_fallthru
          _
        // Predicated region
        $region33: #{moe_layer_forward.1} parent=23 // pred_check
          %p259 = pneg %p168
        $region34: #{moe_layer_forward.1} parent=23 // pred_check_branch
          %261 = sbr.rel (%p259) target = $region36
        $region35: #{moe_layer_forward.1} parent=23 // pred_region
          %s262 = smul.u32 8, %s28
          %p263 = scmp.lt.s32.totalorder %s27, 3
          %s264 = scalar_select %p263, %s27, 3
          %p265 = scmp.lt.s32.totalorder %s262, 7
          %s266 = scalar_select %p265, %s262, 7
          %s267 = smul.addr %s264, 8
          %s268 = sadd.s32 %s266, %s267
          %s269 = smul.addr %s268, 8
          %s270 = scalar_lea.vmem %s5, %s269
          %s271 = smul.u32 8, %s28
        $region36: #{moe_layer_forward.1} parent=23 // pred_fallthru
          _
      $region24: #{moe_layer_forward.1} parent=5 // pred_fallthru
        _
      %p272 = scmp.le.s32.totalorder 1, %s19
      %p273 = scmp.lt.s32.totalorder %s19, 5
      %p274 = pnand %p272, %p273
      %p275 = pneg %p274
      // Predicated region
      $region37: #{moe_layer_forward.1} parent=5 // pred_check
        _
      $region38: #{moe_layer_forward.1} parent=5 // pred_check_branch
        %277 = sbr.rel (%p274) target = $region40
      $region39: #{moe_layer_forward.1} parent=5 // pred_region
        %s278 = ssub.s32 %s19, 1
        %s279 = smul.u32 2, %s29
        %p280 = scmp.lt.s32.totalorder %s279, 1
        %s281 = scalar_select %p280, %s279, 1
        %s282 = smul.addr %s281, 8
        %s283 = scalar_lea.vmem %s1, %s282
        %p284 = pneg %p64
        %p285 = pneg %p61
        %s286 = smul.u32 2, %s29
        %p287 = scmp.lt.s32.totalorder %s286, 1
        %s288 = scalar_select %p287, %s286, 1
        %s289 = smul.addr %s288, 8
        %s290 = scalar_lea.vmem %s2, %s289
        %p291 = pneg %p90
        %p292 = pneg %p87
        %p293 = scmp.lt.s32.totalorder %s30, 3
        %s294 = scalar_select %p293, %s30, 3
        %p295 = scmp.lt.s32.totalorder %s31, 0
        %s296 = scalar_select %p295, %s31, 0
        %s297 = smul.addr %s294, 4
        %s298 = sadd.s32 %s296, %s297
        %s299 = smul.addr %s298, 8
        %s300 = scalar_lea.vmem %s3, %s299
        %p301 = pneg %p118
        %p302 = pneg %p115
        %p303 = scmp.lt.s32.totalorder %s30, 3
        %s304 = scalar_select %p303, %s30, 3
        %p305 = scmp.lt.s32.totalorder %s31, 0
        %s306 = scalar_select %p305, %s31, 0
        %s307 = smul.addr %s304, 4
        %s308 = sadd.s32 %s306, %s307
        %s309 = smul.addr %s308, 8
        %s310 = scalar_lea.vmem %s4, %s309
        %p311 = pneg %p146
        %p312 = pneg %p143
        %s313 = smul.u32 8, %s31
        %p314 = scmp.lt.s32.totalorder %s30, 3
        %s315 = scalar_select %p314, %s30, 3
        %p316 = scmp.lt.s32.totalorder %s313, 7
        %s317 = scalar_select %p316, %s313, 7
        %s318 = smul.addr %s315, 8
        %s319 = sadd.s32 %s317, %s318
        %s320 = smul.addr %s319, 8
        %s321 = scalar_lea.vmem %s5, %s320
        %p322 = pneg %p174
        %p323 = pneg %p171
        %p324 = pneg %p200
        %p325 = pneg %p197
        %s326 = smul.u32 2, %s29
        %p327 = scmp.lt.s32.totalorder %s326, 1
        %s328 = scalar_select %p327, %s326, 1
        %s329 = smul.addr %s328, 8
        %s330 = scalar_lea.vmem %s1, %s329
        %s331 = smul.u32 2, %s29
        %s332 = smul.u32 2, %s29
        %p333 = scmp.lt.s32.totalorder %s332, 1
        %s334 = scalar_select %p333, %s332, 1
        %s335 = smul.addr %s334, 8
        %s336 = scalar_lea.vmem %s2, %s335
        %s337 = smul.u32 2, %s29
        %p338 = scmp.lt.s32.totalorder %s30, 3
        %s339 = scalar_select %p338, %s30, 3
        %p340 = scmp.lt.s32.totalorder %s31, 0
        %s341 = scalar_select %p340, %s31, 0
        %s342 = smul.addr %s339, 4
        %s343 = sadd.s32 %s341, %s342
        %s344 = smul.addr %s343, 8
        %s345 = scalar_lea.vmem %s3, %s344
        %p346 = scmp.lt.s32.totalorder %s30, 3
        %s347 = scalar_select %p346, %s30, 3
        %p348 = scmp.lt.s32.totalorder %s31, 0
        %s349 = scalar_select %p348, %s31, 0
        %s350 = smul.addr %s347, 4
        %s351 = sadd.s32 %s349, %s350
        %s352 = smul.addr %s351, 8
        %s353 = scalar_lea.vmem %s4, %s352
        %s354 = smul.u32 8, %s31
        %p355 = scmp.lt.s32.totalorder %s30, 3
        %s356 = scalar_select %p355, %s30, 3
        %p357 = scmp.lt.s32.totalorder %s354, 7
        %s358 = scalar_select %p357, %s354, 7
        %s359 = smul.addr %s356, 8
        %s360 = sadd.s32 %s358, %s359
        %s361 = smul.addr %s360, 8
        %s362 = scalar_lea.vmem %s5, %s361
        %s363 = smul.u32 8, %s31
        %s364 = smul.u32 2, %s29
        %p365 = scmp.eq.s32.totalorder %s30, 0
        %p366 = scmp.eq.s32.totalorder %s31, 0
        %p367 = pnand %p365, %p366
        %p368 = pneg %p367
        // Predicated region
        $region41: #{moe_layer_forward.1} parent=39 // pred_check
          _
        $region42: #{moe_layer_forward.1} parent=39 // pred_check_branch
          %370 = sbr.rel (%p367) target = $region44
        $region43: #{moe_layer_forward.1} parent=39 // pred_region
          %vm371 = vcmask 261120
          %372 = vst.msk [vmem:[#allocation2] sm:$0xff] %vm371, 0.0
          %373 = vst.msk [vmem:[#allocation2 + $0x8] sm:$0xff] %vm371, 0.0
        $region44: #{moe_layer_forward.1} parent=39 // pred_fallthru
          _
        // Predicated region
        $region45: #{moe_layer_forward.1} parent=39 // pred_check
          %p374 = pneg %p366
        $region46: #{moe_layer_forward.1} parent=39 // pred_check_branch
          %376 = sbr.rel (%p374) target = $region48
        $region47: #{moe_layer_forward.1} parent=39 // pred_region
          %v377 = vld [vmem:[%s330] sm:$0xff]
          %v378 = vld [vmem:[%s330 + $0x8] sm:$0xff]
          %v379 = vlaneseq
          %v380 = vand.u32 %v379, 127
          %v381 = vstv %s30
          %vm382 = vcmp.eq.s32.totalorder %v380, %v381
          %v383 = vsel %vm382, %v377, 0.0
          %v384 = vsel %vm382, %v378, 0.0
          %vm385 = vcmask 31744
          %v386 = vsel %vm385, %v383, 0.0
          %387 = vadd.xlane.f32.xlu0 %v386
          %v388 = vpop.xlane.xlu0 %387
          %v389 = vsel %vm385, %v384, 0.0
          %390 = vadd.xlane.f32.xlu0 %v389
          %v391 = vpop.xlane.xlu0 %390
          %vm392 = vcmask 7168
          %393 = vst.msk [vmem:[#allocation3] sm:$0xff] %vm392, %v388
          %394 = vst.msk [vmem:[#allocation3 + $0x8] sm:$0xff] %vm392, %v391
        $region48: #{moe_layer_forward.1} parent=39 // pred_fallthru
          _
        %s395 = sshra.s32 %s30, 7
        %s396 = sand.u32 %s30, 127
        %s397 = sadd.s32 %s395, %s29
        %s398 = smul.u32 %s397, 128
        %s399 = sshra.s32 %s30, 7
        %s400 = sand.u32 %s30, 127
        %s401 = sadd.s32 %s398, %s400
        %s402 = sld [smem:[#allocation5 + %s401]]
        %p403 = scmp.gt.s32.totalorder %s402, 0
        // Predicated region
        $region49: #{moe_layer_forward.1} parent=39 // pred_check
          %p404 = pneg %p403
        $region50: #{moe_layer_forward.1} parent=39 // pred_check_branch
          %406 = sbr.rel (%p404) target = $region52
        $region51: #{moe_layer_forward.1} parent=39 // pred_region
          %v407 = vld [vmem:[%s336] sm:$0xff]
          %v408 = vld [vmem:[%s336 + $0x8] sm:$0xff]
          %v409 = vld [vmem:[%s345] sm:$0xff]
          %v410 = vld [vmem:[%s345 + $0x8] sm:$0xff]
          %v411 = vld [vmem:[%s345 + $0x10] sm:$0xff]
          %v412 = vld [vmem:[%s345 + $0x18] sm:$0xff]
          %v413 = vld [vmem:[%s353] sm:$0xff]
          %v414 = vld [vmem:[%s353 + $0x8] sm:$0xff]
          %v415 = vld [vmem:[%s353 + $0x10] sm:$0xff]
          %v416 = vld [vmem:[%s353 + $0x18] sm:$0xff]
          %v417 = vld [vmem:[%s362] sm:$0xff]
          %v418 = vld [vmem:[%s362 + $0x8] sm:$0xff]
          %v419 = vld [vmem:[%s362 + $0x10] sm:$0xff]
          %v420 = vld [vmem:[%s362 + $0x18] sm:$0xff]
          %v421 = vld [vmem:[%s362 + $0x20] sm:$0xff]
          %v422 = vld [vmem:[%s362 + $0x28] sm:$0xff]
          %v423 = vld [vmem:[%s362 + $0x30] sm:$0xff]
          %v424 = vld [vmem:[%s362 + $0x38] sm:$0xff]
          %vm425 = vcmask 261120
          %v427 = vsel %vm425, %v407, 0
          %v430 = vsel %vm425, %v408, 0
          %432 = vmatprep.subr.mxu0 0.0
          %433 = vmatpush1.msra.mxu0 0.0
          %434 = vmatprep.subr.mxu0 0.0
          %435 = vmatpush1.msra.mxu0 0.0
          %436 = vmatprep.subr.mxu0 0.0
          %437 = vmatpush1.msra.mxu0 0.0
          %438 = vmatprep.subr.mxu0 0.0
          %439 = vmatpush1.msra.mxu0 0.0
          %440 = vmatprep.subr.mxu0 0.0
          %441 = vmatpush1.msra.mxu0 0.0
          %442 = vmatprep.subr.mxu0 0.0
          %443 = vmatpush1.msra.mxu0 0.0
          %444 = vmatprep.subr.mxu0 0.0
          %445 = vmatpush1.msra.mxu0 0.0
          %446 = vmatprep.subr.mxu0 0.0
          %447 = vmatpush1.msra.mxu0 0.0
          %448 = vmatprep.subr.mxu0 0.0
          %449 = vmatpush1.msra.mxu0 0.0
          %450 = vmatprep.subr.mxu0 0.0
          %451 = vmatpush1.msra.mxu0 0.0
          %452 = vmatprep.subr.mxu0 0.0
          %453 = vmatpush1.msra.mxu0 0.0
          %454 = vmatprep.subr.mxu0 0.0
          %455 = vmatpush1.msra.mxu0 0.0
          %456 = vmatprep.subr.mxu0 0.0
          %457 = vmatpush1.msra.mxu0 %v412
          %458 = vmatprep.subr.mxu0 0.0
          %459 = vmatpush1.msra.mxu0 %v411
          %460 = vmatprep.subr.mxu0 0.0
          %461 = vmatpush1.msra.mxu0 %v410
          %462 = vmatprep.subr.mxu0 0.0
          %463 = vmatpush1.msra.mxu0 %v409
          %464 = vmatprep.subr.mxu0 0.0
          %465 = vmatpush2.msra.mxu0 0.0
          %466 = vmatprep.subr.mxu0 0.0
          %467 = vmatpush2.msra.mxu0 0.0
          %468 = vmatprep.subr.mxu0 0.0
          %469 = vmatpush2.msra.mxu0 0.0
          %470 = vmatprep.subr.mxu0 0.0
          %471 = vmatpush2.msra.mxu0 0.0
          %472 = vmatprep.subr.mxu0 0.0
          %473 = vmatpush2.msra.mxu0 0.0
          %474 = vmatprep.subr.mxu0 0.0
          %475 = vmatpush2.msra.mxu0 0.0
          %476 = vmatprep.subr.mxu0 0.0
          %477 = vmatpush2.msra.mxu0 0.0
          %478 = vmatprep.subr.mxu0 0.0
          %479 = vmatpush2.msra.mxu0 0.0
          %480 = vmatprep.subr.mxu0 0.0
          %481 = vmatpush2.msra.mxu0 0.0
          %482 = vmatprep.subr.mxu0 0.0
          %483 = vmatpush2.msra.mxu0 0.0
          %484 = vmatprep.subr.mxu0 0.0
          %485 = vmatpush2.msra.mxu0 0.0
          %486 = vmatprep.subr.mxu0 0.0
          %487 = vmatpush2.msra.mxu0 0.0
          %488 = vmatprep.subr.mxu0 0.0
          %489 = vmatpush2.msra.mxu0 0.0
          %490 = vmatprep.subr.mxu0 0.0
          %491 = vmatpush2.msra.mxu0 0.0
          %492 = vmatprep.subr.mxu0 0.0
          %493 = vmatpush2.msra.mxu0 0.0
          %494 = vmatprep.subr.mxu0 0.0
          %495 = vmatpush2.msra.mxu0 0.0
          %496 = vmatprep.mubr.f32.mxu0 0.0
          %497 = vmatmul.mubr.f32.gmra.mxu0 %v427
          %v498 = vpop.f32.mrf.mxu0
          %v499 = vadd.f32 0.0, %v498
          %v500 = vpop.f32.mrf.mxu0
          %501 = vmatprep.mubr.f32.mxu0 0.0
          %502 = vmatmul.mubr.f32.gmra.mxu0 %v430
          %v503 = vpop.f32.mrf.mxu0
          %v504 = vadd.f32 0.0, %v503
          %v505 = vpop.f32.mrf.mxu0
          %506 = vdwg.mxu0
          %507 = vmatprep.subr.mxu0 0.0
          %508 = vmatpush1.msra.mxu0 0.0
          %509 = vmatprep.subr.mxu0 0.0
          %510 = vmatpush1.msra.mxu0 0.0
          %511 = vmatprep.subr.mxu0 0.0
          %512 = vmatpush1.msra.mxu0 0.0
          %513 = vmatprep.subr.mxu0 0.0
          %514 = vmatpush1.msra.mxu0 0.0
          %515 = vmatprep.subr.mxu0 0.0
          %516 = vmatpush1.msra.mxu0 0.0
          %517 = vmatprep.subr.mxu0 0.0
          %518 = vmatpush1.msra.mxu0 0.0
          %519 = vmatprep.subr.mxu0 0.0
          %520 = vmatpush1.msra.mxu0 0.0
          %521 = vmatprep.subr.mxu0 0.0
          %522 = vmatpush1.msra.mxu0 0.0
          %523 = vmatprep.subr.mxu0 0.0
          %524 = vmatpush1.msra.mxu0 0.0
          %525 = vmatprep.subr.mxu0 0.0
          %526 = vmatpush1.msra.mxu0 0.0
          %527 = vmatprep.subr.mxu0 0.0
          %528 = vmatpush1.msra.mxu0 0.0
          %529 = vmatprep.subr.mxu0 0.0
          %530 = vmatpush1.msra.mxu0 0.0
          %531 = vmatprep.subr.mxu0 0.0
          %532 = vmatpush1.msra.mxu0 %v416
          %533 = vmatprep.subr.mxu0 0.0
          %534 = vmatpush1.msra.mxu0 %v415
          %535 = vmatprep.subr.mxu0 0.0
          %536 = vmatpush1.msra.mxu0 %v414
          %537 = vmatprep.subr.mxu0 0.0
          %538 = vmatpush1.msra.mxu0 %v413
          %539 = vmatprep.subr.mxu0 0.0
          %540 = vmatpush2.msra.mxu0 0.0
          %541 = vmatprep.subr.mxu0 0.0
          %542 = vmatpush2.msra.mxu0 0.0
          %543 = vmatprep.subr.mxu0 0.0
          %544 = vmatpush2.msra.mxu0 0.0
          %545 = vmatprep.subr.mxu0 0.0
          %546 = vmatpush2.msra.mxu0 0.0
          %547 = vmatprep.subr.mxu0 0.0
          %548 = vmatpush2.msra.mxu0 0.0
          %549 = vmatprep.subr.mxu0 0.0
          %550 = vmatpush2.msra.mxu0 0.0
          %551 = vmatprep.subr.mxu0 0.0
          %552 = vmatpush2.msra.mxu0 0.0
          %553 = vmatprep.subr.mxu0 0.0
          %554 = vmatpush2.msra.mxu0 0.0
          %555 = vmatprep.subr.mxu0 0.0
          %556 = vmatpush2.msra.mxu0 0.0
          %557 = vmatprep.subr.mxu0 0.0
          %558 = vmatpush2.msra.mxu0 0.0
          %559 = vmatprep.subr.mxu0 0.0
          %560 = vmatpush2.msra.mxu0 0.0
          %561 = vmatprep.subr.mxu0 0.0
          %562 = vmatpush2.msra.mxu0 0.0
          %563 = vmatprep.subr.mxu0 0.0
          %564 = vmatpush2.msra.mxu0 0.0
          %565 = vmatprep.subr.mxu0 0.0
          %566 = vmatpush2.msra.mxu0 0.0
          %567 = vmatprep.subr.mxu0 0.0
          %568 = vmatpush2.msra.mxu0 0.0
          %569 = vmatprep.subr.mxu0 0.0
          %570 = vmatpush2.msra.mxu0 0.0
          %571 = vmatprep.mubr.f32.mxu0 0.0
          %572 = vmatmul.mubr.f32.gmra.mxu0 %v427
          %v573 = vpop.f32.mrf.mxu0
          %v574 = vadd.f32 0.0, %v573
          %v575 = vpop.f32.mrf.mxu0
          %576 = vmatprep.mubr.f32.mxu0 0.0
          %577 = vmatmul.mubr.f32.gmra.mxu0 %v430
          %v578 = vpop.f32.mrf.mxu0
          %v579 = vadd.f32 0.0, %v578
          %v580 = vpop.f32.mrf.mxu0
          %581 = vdwg.mxu0
          %v582 = vxor.u32 %v499, 2147483648
          %v583 = vxor.u32 %v504, 2147483648
          %v584 = vmul.f32 %v582, 1.442695
          %v585 = vpow.pop %v584
          %v586 = vmul.f32 %v583, 1.442695
          %v587 = vpow.pop %v586
          %v588 = vadd.f32 %v585, 1.0
          %v589 = vadd.f32 %v587, 1.0
          %v590 = vrcp.pop %v588
          %v591 = vmul.f32 1.0, %v590
          %v592 = vrcp.pop %v589
          %v593 = vmul.f32 1.0, %v592
          %v594 = vmul.f32 %v499, %v591
          %v595 = vmul.f32 %v504, %v593
          %v596 = vmul.f32 %v594, %v574
          %v597 = vmul.f32 %v595, %v579
          %vm598 = vcmask 523264
          %v600 = vsel %vm598, %v596, 0
          %v603 = vsel %vm598, %v597, 0
          %605 = vmatprep.subr.mxu0 0.0
          %606 = vmatpush1.msra.mxu0 0.0
          %607 = vmatprep.subr.mxu0 0.0
          %608 = vmatpush1.msra.mxu0 0.0
          %609 = vmatprep.subr.mxu0 0.0
          %610 = vmatpush1.msra.mxu0 0.0
          %611 = vmatprep.subr.mxu0 0.0
          %612 = vmatpush1.msra.mxu0 0.0
          %613 = vmatprep.subr.mxu0 0.0
          %614 = vmatpush1.msra.mxu0 0.0
          %615 = vmatprep.subr.mxu0 0.0
          %616 = vmatpush1.msra.mxu0 0.0
          %617 = vmatprep.subr.mxu0 0.0
          %618 = vmatpush1.msra.mxu0 0.0
          %619 = vmatprep.subr.mxu0 0.0
          %620 = vmatpush1.msra.mxu0 0.0
          %621 = vmatprep.subr.mxu0 0.0
          %622 = vmatpush1.msra.mxu0 %v424
          %623 = vmatprep.subr.mxu0 0.0
          %624 = vmatpush1.msra.mxu0 %v423
          %625 = vmatprep.subr.mxu0 0.0
          %626 = vmatpush1.msra.mxu0 %v422
          %627 = vmatprep.subr.mxu0 0.0
          %628 = vmatpush1.msra.mxu0 %v421
          %629 = vmatprep.subr.mxu0 0.0
          %630 = vmatpush1.msra.mxu0 %v420
          %631 = vmatprep.subr.mxu0 0.0
          %632 = vmatpush1.msra.mxu0 %v419
          %633 = vmatprep.subr.mxu0 0.0
          %634 = vmatpush1.msra.mxu0 %v418
          %635 = vmatprep.subr.mxu0 0.0
          %636 = vmatpush1.msra.mxu0 %v417
          %637 = vmatprep.subr.mxu0 0.0
          %638 = vmatpush2.msra.mxu0 0.0
          %639 = vmatprep.subr.mxu0 0.0
          %640 = vmatpush2.msra.mxu0 0.0
          %641 = vmatprep.subr.mxu0 0.0
          %642 = vmatpush2.msra.mxu0 0.0
          %643 = vmatprep.subr.mxu0 0.0
          %644 = vmatpush2.msra.mxu0 0.0
          %645 = vmatprep.subr.mxu0 0.0
          %646 = vmatpush2.msra.mxu0 0.0
          %647 = vmatprep.subr.mxu0 0.0
          %648 = vmatpush2.msra.mxu0 0.0
          %649 = vmatprep.subr.mxu0 0.0
          %650 = vmatpush2.msra.mxu0 0.0
          %651 = vmatprep.subr.mxu0 0.0
          %652 = vmatpush2.msra.mxu0 0.0
          %653 = vmatprep.subr.mxu0 0.0
          %654 = vmatpush2.msra.mxu0 0.0
          %655 = vmatprep.subr.mxu0 0.0
          %656 = vmatpush2.msra.mxu0 0.0
          %657 = vmatprep.subr.mxu0 0.0
          %658 = vmatpush2.msra.mxu0 0.0
          %659 = vmatprep.subr.mxu0 0.0
          %660 = vmatpush2.msra.mxu0 0.0
          %661 = vmatprep.subr.mxu0 0.0
          %662 = vmatpush2.msra.mxu0 0.0
          %663 = vmatprep.subr.mxu0 0.0
          %664 = vmatpush2.msra.mxu0 0.0
          %665 = vmatprep.subr.mxu0 0.0
          %666 = vmatpush2.msra.mxu0 0.0
          %667 = vmatprep.subr.mxu0 0.0
          %668 = vmatpush2.msra.mxu0 0.0
          %669 = vmatprep.mubr.f32.mxu0 0.0
          %670 = vmatmul.mubr.f32.gmra.mxu0 %v600
          %v671 = vpop.f32.mrf.mxu0
          %v672 = vadd.f32 0.0, %v671
          %v673 = vpop.f32.mrf.mxu0
          %674 = vmatprep.mubr.f32.mxu0 0.0
          %675 = vmatmul.mubr.f32.gmra.mxu0 %v603
          %v676 = vpop.f32.mrf.mxu0
          %v677 = vadd.f32 0.0, %v676
          %v678 = vpop.f32.mrf.mxu0
          %679 = vdwg.mxu0
          %v680 = vld [vmem:[#allocation2] sm:$0xff]
          %v681 = vld [vmem:[#allocation2 + $0x8] sm:$0xff]
          %v682 = vld [vmem:[#allocation3] sm:$0xff]
          %v683 = vld [vmem:[#allocation3 + $0x8] sm:$0xff]
          %685 = vset.pattern.permute.xlu0 0
          %686 = vperm.xlu0 %685, %v682
          %v687 = vpop.permute.xlu0 %686
          %690 = vset.pattern.permute.xlu0 0
          %691 = vperm.xlu0 %690, %v683
          %v692 = vpop.permute.xlu0 %691
          %v694 = vmul.f32 %v687, %v672
          %v695 = vmul.f32 %v692, %v677
          %v696 = vadd.f32 %v680, %v694
          %v697 = vadd.f32 %v681, %v695
          %698 = vst.msk [vmem:[#allocation2] sm:$0xff] %vm425, %v696
          %699 = vst.msk [vmem:[#allocation2 + $0x8] sm:$0xff] %vm425, %v697
        $region52: #{moe_layer_forward.1} parent=39 // pred_fallthru
          _
        %p700 = scmp.eq.s32.totalorder %s30, 3
        %p701 = pnand %p700, %p366
        %p702 = pneg %p701
        // Predicated region
        $region53: #{moe_layer_forward.1} parent=39 // pred_check
          _
        $region54: #{moe_layer_forward.1} parent=39 // pred_check_branch
          %704 = sbr.rel (%p701) target = $region56
        $region55: #{moe_layer_forward.1} parent=39 // pred_region
          %v705 = vld [vmem:[#allocation2] sm:$0xff]
          %v706 = vld [vmem:[#allocation2 + $0x8] sm:$0xff]
          %vm707 = vcmask 261120
          %708 = vst.msk [vmem:[#allocation6] sm:$0xff] %vm707, %v705
          %709 = vst.msk [vmem:[#allocation6 + $0x8] sm:$0xff] %vm707, %v706
        $region56: #{moe_layer_forward.1} parent=39 // pred_fallthru
          _
        // Predicated region
        $region57: #{moe_layer_forward.1} parent=39 // pred_check
          %p710 = pneg %p197
        $region58: #{moe_layer_forward.1} parent=39 // pred_check_branch
          %712 = sbr.rel (%p710) target = $region60
        $region59: #{moe_layer_forward.1} parent=39 // pred_region
          %s713 = smul.u32 2, %s29
          %s715 = ssub.s32 256, 256
          %716 = vsyncadd [#allocation7], %s715
          %s717 = smul.addr %s713, 128
          %s718 = scalar_lea.hbm %s6, %s717
          %s719 = sshll.u32 [#allocation6], 4
          %s720 = int_to_ptr.vmem [resolvable:$true] %s719
          %725 = dma.vmem_to_hbm [thread:$0]  %s720, 256, %s718, [#allocation7], 128, 128, 8
        $region60: #{moe_layer_forward.1} parent=39 // pred_fallthru
          _
        // Predicated region
        $region61: #{moe_layer_forward.1} parent=39 // pred_check
          %p726 = pneg %p197
        $region62: #{moe_layer_forward.1} parent=39 // pred_check_branch
          %728 = sbr.rel (%p726) target = $region64
        $region63: #{moe_layer_forward.1} parent=39 // pred_region
          %729 = dma.done [#allocation7], 256
        $region64: #{moe_layer_forward.1} parent=39 // pred_fallthru
          _
      $region40: #{moe_layer_forward.1} parent=5 // pred_fallthru
        _
      %p730 = scmp.le.s32.totalorder 2, %s19
      // Predicated region
      $region65: #{moe_layer_forward.1} parent=5 // pred_check
        %p731 = pneg %p730
      $region66: #{moe_layer_forward.1} parent=5 // pred_check_branch
        %733 = sbr.rel (%p731) target = $region68
      $region67: #{moe_layer_forward.1} parent=5 // pred_region
        %s734 = ssub.s32 %s19, 2
      $region68: #{moe_layer_forward.1} parent=5 // pred_fallthru
        _
    $region6: #{moe_layer_forward.1} parent=1 // loop_footer
      %s23 = sadd.s32 1, %s19
    $region7: #{moe_layer_forward.1} parent=1 // loop_footer_branch
      %18 = sbr.rel target = $region3
    $region8: #{moe_layer_forward.1} parent=1 // loop_exit
      _
    %735 = vsyncpa [#allocation7], 1
    %s736 = scalar_lea.sflag [#allocation7], 1
    %737 = vsyncpa %s736, 1

</llo_original>
